<compile_context>
chip_gen: v6e
topology: v6e:2x2x1
jax: 0.10.0
libtpu: 0.0.40
codegen_flags: <defaults>
</compile_context>

<pallas_src>
import jax
import jax.numpy as jnp
from jax.experimental import pallas as pl
from jax.experimental.pallas import tpu as pltpu


_MIN_CHUNK_BYTES = 1 << 20   # don't split copies smaller than ~1 MiB per chunk
_MAX_DMA_CHUNKS = 4          # a handful of concurrent DMAs saturates HBM BW


def _alias_identity_kernel(x_hbm, o_hbm):
    # Output is aliased to the input (input_output_aliases={0: 0}), so its
    # bytes already hold y = x: no data movement needed at all.
    del x_hbm, o_hbm


def _make_dma_copy_kernel(chunks):
    """Build a kernel that copies x -> o with HBM->HBM DMAs.

    chunks: None for a single whole-array copy, otherwise a static tuple of
            (start, size) slices along the leading axis (one DMA + one
            semaphore each, all started before any wait).
    """

    def kernel(x_hbm, o_hbm, sems):
        if chunks is None:
            cp = pltpu.make_async_copy(x_hbm, o_hbm, sems.at[0])
            cp.start()
            cp.wait()
            return
        copies = []
        for i, (start, size) in enumerate(chunks):
            cp = pltpu.make_async_copy(
                x_hbm.at[pl.ds(start, size)],
                o_hbm.at[pl.ds(start, size)],
                sems.at[i],
            )
            cp.start()
            copies.append(cp)
        for cp in copies:  # wait only after every DMA is in flight
            cp.wait()

    return kernel


def _plan_chunks(shape, dtype):
    """Static leading-axis chunking plan: None (one copy) or ((start, size), ...)."""
    if len(shape) == 0:
        return None
    lead = shape[0]
    total_bytes = 1
    for d in shape:
        total_bytes *= d
    total_bytes *= jnp.dtype(dtype).itemsize
    if lead < 2 or total_bytes < 2 * _MIN_CHUNK_BYTES:
        return None
    n_chunks = int(min(_MAX_DMA_CHUNKS, lead, total_bytes // _MIN_CHUNK_BYTES))
    if n_chunks < 2:
        return None
    base, rem = divmod(lead, n_chunks)
    chunks, start = [], 0
    for i in range(n_chunks):
        size = base + (1 if i < rem else 0)
        chunks.append((start, size))
        start += size
    return tuple(chunks)


def identity_forward_pallas(x, *, donate=False):
    """Materialize y = x via a Pallas TPU kernel (pure HBM->HBM DMA copy)."""
    if x.size == 0:
        return x

    hbm_spec = pl.BlockSpec(memory_space=pl.ANY)
    out_shape = jax.ShapeDtypeStruct(x.shape, x.dtype)

    if donate:
        # Aliased output: fresh handle, zero HBM traffic (no-op kernel body).
        return pl.pallas_call(
            _alias_identity_kernel,
            out_shape=out_shape,
            in_specs=[hbm_spec],
            out_specs=hbm_spec,
            input_output_aliases={0: 0},
        )(x)

    chunks = _plan_chunks(x.shape, x.dtype)
    n_sems = len(chunks) if chunks is not None else 1
    return pl.pallas_call(
        _make_dma_copy_kernel(chunks),
        out_shape=out_shape,
        in_specs=[hbm_spec],
        out_specs=hbm_spec,
        scratch_shapes=[pltpu.SemaphoreType.DMA((n_sems,))],
    )(x)


def identity_forward(x, *, force_pallas=False, donate=False):
    """Identity forward pass (y = x), matching nn.Identity semantics.

    Default path returns x untouched — identity needs zero data movement, so
    this is strictly optimal on every TPU generation. Set force_pallas=True to
    materialize a fresh buffer via the HBM->HBM DMA kernel (donate=True makes
    even that free by aliasing the output onto the input buffer).
    """
    if not force_pallas:
        return x
    return identity_forward_pallas(x, donate=donate)


if __name__ == "__main__":
    key = jax.random.PRNGKey(0)
    # NCHW-style small input: (batch=2, channels=4, H=16, W=16)
    x = jax.random.normal(key, (2, 4, 16, 16), dtype=jnp.float32)

    # 1) Default (optimal) path: zero-copy identity.
    y_fast = jax.block_until_ready(identity_forward(x))
    assert y_fast.shape == x.shape and y_fast.dtype == x.dtype
    assert bool(jnp.all(y_fast == x))

    # 2) Materialized Pallas path: single HBM->HBM DMA (no VMEM round trip).
    y = jax.block_until_ready(identity_forward(x, force_pallas=True))
    assert y.shape == x.shape and y.dtype == x.dtype
    assert bool(jnp.all(y == x))

    # 3) Aliased (donated) Pallas path: zero-traffic materialized output.
    y_alias = jax.block_until_ready(
        identity_forward(x, force_pallas=True, donate=True))
    assert y_alias.shape == x.shape and y_alias.dtype == x.dtype
    assert bool(jnp.all(y_alias == x))

    k1, k2, k3 = jax.random.split(key, 3)

    # 4) Large input (2 MiB): exercises the multi-chunk concurrent-DMA path.
    x_big = jax.random.normal(k1, (8, 64, 32, 32), dtype=jnp.float32)
    y_big = jax.block_until_ready(identity_forward_pallas(x_big))
    assert y_big.shape == x_big.shape and bool(jnp.all(y_big == x_big))

    # 5) Odd / non-128-aligned shape: copied directly, no pad/slice passes.
    x_odd = jax.random.normal(k2, (3, 5, 7, 11), dtype=jnp.float32)
    y_odd = jax.block_until_ready(identity_forward_pallas(x_odd))
    assert y_odd.shape == x_odd.shape and bool(jnp.all(y_odd == x_odd))

    # 6) Sub-32-bit dtype: DMA path is dtype/layout agnostic (no sublane rules).
    x_bf16 = jax.random.normal(k3, (2, 4, 16, 16), dtype=jnp.bfloat16)
    y_bf16 = jax.block_until_ready(identity_forward_pallas(x_bf16))
    assert y_bf16.dtype == jnp.bfloat16 and bool(jnp.all(y_bf16 == x_bf16))

    print("KERNEL_OK")
</pallas_src>

<mosaic_0001>
module attributes {stable_mosaic.version = 11 : i64} {
  func.func @kernel(%arg0: memref<2x4x16x16xf32, #tpu.memory_space<any>>, %arg1: memref<2x4x16x16xf32, #tpu.memory_space<any>>, %arg2: memref<1x!tpu.dma_semaphore, #tpu.memory_space<semaphore_mem>>) attributes {dimension_semantics = [], scalar_prefetch = 0 : i64, scratch_operands = 1 : i64, tpu.core_type = #tpu.core_type<tc>} {
    %c0_i32 = arith.constant 0 : i32
    %0 = tpu.memref_slice %arg2[%c0_i32] : memref<1x!tpu.dma_semaphore, #tpu.memory_space<semaphore_mem>> -> memref<1x!tpu.dma_semaphore, #tpu.memory_space<semaphore_mem>>
    %1 = tpu.memref_squeeze %0 : memref<1x!tpu.dma_semaphore, #tpu.memory_space<semaphore_mem>> -> memref<!tpu.dma_semaphore, #tpu.memory_space<semaphore_mem>>
    tpu.enqueue_dma source(%arg0 : memref<2x4x16x16xf32, #tpu.memory_space<any>>) target(%arg1 : memref<2x4x16x16xf32, #tpu.memory_space<any>>) target_semaphore(%1 : memref<!tpu.dma_semaphore, #tpu.memory_space<semaphore_mem>>)
    %c0_i32_0 = arith.constant 0 : i32
    %2 = tpu.memref_slice %arg2[%c0_i32_0] : memref<1x!tpu.dma_semaphore, #tpu.memory_space<semaphore_mem>> -> memref<1x!tpu.dma_semaphore, #tpu.memory_space<semaphore_mem>>
    %3 = tpu.memref_squeeze %2 : memref<1x!tpu.dma_semaphore, #tpu.memory_space<semaphore_mem>> -> memref<!tpu.dma_semaphore, #tpu.memory_space<semaphore_mem>>
    tpu.wait_dma2 semaphore(%3 : memref<!tpu.dma_semaphore, #tpu.memory_space<semaphore_mem>>) src(%arg0 : memref<2x4x16x16xf32, #tpu.memory_space<any>>) dst(%arg1 : memref<2x4x16x16xf32, #tpu.memory_space<any>>)
    return
  }
}

</mosaic_0001>

<llo_original>
// kernel: tpu_custom_call.1
$region0: #{tpu_custom_call.1}
  #allocation0 [shape = 'u32[]', space=smem, size = 0x4, offset = 0x4, fixed_abs, tag = 'smem constant byte address 0x4 - core index']
  #allocation1 [shape = 'u32[144,128]{1,0:T(1,128)}', space=vmem, size = 0x12000, scoped, tag = 'internal scratch']
  #allocation2 [shape = 's32[1]{0}', space=sflag, size = 0x4, scoped, tag = 'scratch operand']
  #allocation3 [shape = 's32[]', space=sflag, size = 0x4, offset = 0, fixed_abs, tag = 'sflag constant byte address 0x0 - dummy sync flag']
  #allocation4 [shape = 'u32[0]{0}', space=smem, size = 0, offset = 0, fixed_abs, tag = 'smem constant byte address 0x0 - null']
  %s0 = inlined_call_operand.hbm [shape: f32[2,4,16,16], index: 0, kind: input, shape index: {}]
  %s1 = inlined_call_operand.hbm [shape: f32[2,4,16,16], index: 1, kind: output, shape index: {}]
  %s2 = sld [smem:[#allocation0]]
  $region2: #{tpu_custom_call.1} parent=0
    _
  %s4 = ssub.s32 1, %s2
  %s5 = scalar_select 0, %s4, %s2
  %s7 = sshll.u32 1, 14
  %s8 = sxor.u32 4294967295, %s7
  %12 = dma.general %s0, 2048, %s1, [#allocation2], 131072, [#allocation4], 0, 0
  %s13 = smul.u32 2, 4
  %s14 = smul.u32 %s13, 16
  %s15 = smul.u32 %s14, 1
  %s16 = sshll.u32 %s15, 4
  %17 = dma.done [#allocation2], %s16
  %18 = vsyncmov [#allocation2]
  %s19 = vpop.sfrf %18
  %p20 = scmp.eq.s32.totalorder %s19, 0
  %p21 = pneg %p20
  %23 = shalt.err (%p21)

</llo_original>
